<compile_context>
chip_gen: v6e
topology: v6e:2x2x1
jax: 0.10.0
libtpu: 0.0.40
codegen_flags: <defaults>
</compile_context>

<pallas_src>
import jax
import jax.numpy as jnp
from jax.experimental import pallas as pl
from jax.experimental.pallas import tpu as pltpu

BAR_X = 4.0
BAZ_X = 2.0
QUX_X = 3.0


def _model_kernel(a_ref, b_ref, o_ref):
    a = a_ref[...]
    b = b_ref[...]
    # Folded form of (a*b + 4) + 2*b - a - 3  ==  (a + 2)*(b - 1) + 3
    # (1 mul + 3 adds; kernel is HBM-bound so VALU work is free filler anyway).
    o_ref[...] = (a + BAZ_X) * (b - 1.0) + QUX_X


def model_ref(a, b):
    # Pure-JAX reference mirroring the original module structure / op order.
    bar = a * b + BAR_X
    foo = bar + b * BAZ_X
    return foo - a - QUX_X


_LANE = 128
_MAX_COLS = 2048                  # wide lane-dense slab -> unmasked full-width stores
_SMALL_BYTES = 1 << 19            # <=512 KiB per tensor: single resident block
_MAX_BLOCK_BYTES = 8 << 20        # 8 MiB blocks amortize the ~0.35us/step overhead
_MAX_VMEM_BUDGET = 96 << 20       # never ask for more than 96 MiB scoped VMEM
_FALLBACK_VMEM_CAP = 64 << 20     # conservative (v7x per-TC physical VMEM)


def _pick_cols(total):
    cols = _MAX_COLS
    while cols >= _LANE:
        if total % cols == 0:
            return cols
        cols //= 2
    return None


def _vmem_capacity_bytes():
    """Generation-aware physical VMEM size; safe fallback if query unavailable."""
    try:
        info = pltpu.get_tpu_info()
        cap = int(getattr(info, "vmem_capacity_bytes", 0) or 0)
        if cap > 0:
            return cap
    except Exception:
        pass
    return _FALLBACK_VMEM_CAP


def _ceil_div(a, b):
    return -(-a // b)


def _pick_tile_rows(rows, row_bytes, block_bytes, sub):
    """Rows per block: <= block_bytes, sublane-aligned, even step count preferred."""
    tile_r = min(rows, max(1, block_bytes // row_bytes))
    tile_r = max(sub, (tile_r // sub) * sub)

    if tile_r >= rows:
        # Whole slab fits one block: still split into 2 even steps when possible
        # so v7x's two TensorCores both get work (negligible cost on 1-TC parts).
        if rows >= 2 * sub:
            half = _ceil_div(rows, 2)
            tile_r = max(sub, _ceil_div(half, sub) * sub)
        else:
            return rows

    grid_n = _ceil_div(rows, tile_r)
    if grid_n > 1 and grid_n % 2 == 1:
        # Prefer an even step count for balanced 2-TC sharding on v7x.
        t = max(sub, (_ceil_div(rows, grid_n + 1) // sub) * sub)
        if _ceil_div(rows, t) % 2 == 0:
            tile_r = t
    return tile_r


def model_forward(a, b):
    assert a.shape == b.shape and a.dtype == b.dtype
    orig_shape = a.shape
    total = a.size
    itemsize = jnp.dtype(a.dtype).itemsize

    cols = _pick_cols(total)
    if cols is None:
        # TODO(synk): element count not a multiple of 128 lanes; let XLA fuse the 5-op chain.
        return model_ref(a, b)

    rows = total // cols
    a2 = a.reshape(rows, cols)
    b2 = b.reshape(rows, cols)

    if total * itemsize <= _SMALL_BYTES:
        # Tiny input: whole slab fits trivially in VMEM; skip grid/pipeline machinery.
        out2 = pl.pallas_call(
            _model_kernel,
            out_shape=jax.ShapeDtypeStruct((rows, cols), a.dtype),
            in_specs=[
                pl.BlockSpec(memory_space=pltpu.MemorySpace.VMEM),
                pl.BlockSpec(memory_space=pltpu.MemorySpace.VMEM),
            ],
            out_specs=pl.BlockSpec(memory_space=pltpu.MemorySpace.VMEM),
        )(a2, b2)
        return out2.reshape(orig_shape)

    # Large input: pipelined, row-tiled elementwise pass.
    cap = _vmem_capacity_bytes()
    budget = min((cap * 3) // 4, _MAX_VMEM_BUDGET)       # 48 MiB on v7x, 96 MiB on v5e/v6e
    block_bytes = min(_MAX_BLOCK_BYTES, budget // 6)     # 6x = 2 in + 1 out, double-buffered

    sub = max(8, 32 // itemsize)                         # sublane multiple: f32=8, bf16=16, i8=32
    row_bytes = cols * itemsize
    tile_r = _pick_tile_rows(rows, row_bytes, block_bytes, sub)
    grid_n = pl.cdiv(rows, tile_r)

    out2 = pl.pallas_call(
        _model_kernel,
        out_shape=jax.ShapeDtypeStruct((rows, cols), a.dtype),
        grid=(grid_n,),
        in_specs=[
            pl.BlockSpec((tile_r, cols), lambda i: (i, 0)),
            pl.BlockSpec((tile_r, cols), lambda i: (i, 0)),
        ],
        out_specs=pl.BlockSpec((tile_r, cols), lambda i: (i, 0)),
        compiler_params=pltpu.CompilerParams(
            dimension_semantics=("parallel",),           # independent row blocks -> 2-TC sharding
            vmem_limit_bytes=int(budget),                # explicit, generation-aware budget
        ),
    )(a2, b2)
    return out2.reshape(orig_shape)


if __name__ == "__main__":
    key = jax.random.PRNGKey(0)
    ka, kb = jax.random.split(key)

    # Small NCHW shape implied by the module's elementwise forward.
    shape = (2, 4, 16, 16)
    a = jax.random.normal(ka, shape, dtype=jnp.float32)
    b = jax.random.normal(kb, shape, dtype=jnp.float32)

    out = model_forward(a, b)
    jax.block_until_ready(out)
    ref = model_ref(a, b)
    assert out.shape == shape
    assert jnp.allclose(out, ref, atol=1e-6, rtol=1e-6)

    # Also exercise the pipelined row-tiled path on a larger slab.
    big_shape = (16, 32, 64, 64)  # 8 MiB/tensor f32 -> rows=1024, cols=2048, even grid
    kc, kd = jax.random.split(kb)
    ab = jax.random.normal(kc, big_shape, dtype=jnp.float32)
    bb = jax.random.normal(kd, big_shape, dtype=jnp.float32)
    out_big = model_forward(ab, bb)
    jax.block_until_ready(out_big)
    assert jnp.allclose(out_big, model_ref(ab, bb), atol=1e-6, rtol=1e-6)

    print("KERNEL_OK")
</pallas_src>

<mosaic_0001>
module attributes {stable_mosaic.version = 11 : i64} {
  func.func @_model_kernel(%arg0: memref<1x2048xf32, #tpu.memory_space<vmem>>, %arg1: memref<1x2048xf32, #tpu.memory_space<vmem>>, %arg2: memref<1x2048xf32, #tpu.memory_space<vmem>>) attributes {dimension_semantics = [], scalar_prefetch = 0 : i64, scratch_operands = 0 : i64, tpu.core_type = #tpu.core_type<tc>} {
    %c0 = arith.constant 0 : index
    %c0_0 = arith.constant 0 : index
    %0 = vector.load %arg0[%c0, %c0_0] : memref<1x2048xf32, #tpu.memory_space<vmem>>, vector<1x2048xf32>
    %c0_1 = arith.constant 0 : index
    %c0_2 = arith.constant 0 : index
    %1 = vector.load %arg1[%c0_1, %c0_2] : memref<1x2048xf32, #tpu.memory_space<vmem>>, vector<1x2048xf32>
    %cst = arith.constant 2.000000e+00 : f32
    %2 = vector.broadcast %cst : f32 to vector<1x2048xf32>
    %3 = arith.addf %0, %2 : vector<1x2048xf32>
    %cst_3 = arith.constant 1.000000e+00 : f32
    %4 = vector.broadcast %cst_3 : f32 to vector<1x2048xf32>
    %5 = arith.subf %1, %4 : vector<1x2048xf32>
    %6 = arith.mulf %3, %5 : vector<1x2048xf32>
    %cst_4 = arith.constant 3.000000e+00 : f32
    %7 = vector.broadcast %cst_4 : f32 to vector<1x2048xf32>
    %8 = arith.addf %6, %7 : vector<1x2048xf32>
    %c0_5 = arith.constant 0 : index
    %c0_6 = arith.constant 0 : index
    %9 = vector.load %arg2[%c0_5, %c0_6] : memref<1x2048xf32, #tpu.memory_space<vmem>>, vector<1x2048xf32>
    tpu.vector_store %arg2[%c0_5, %c0_6], %8 {strides = array<i32>} : memref<1x2048xf32, #tpu.memory_space<vmem>>, vector<1x2048xf32>,
    return
  }
}

</mosaic_0001>

<llo_original>
// kernel: tpu_custom_call.1
$region0: #{tpu_custom_call.1}
  #allocation0 [shape = 'u32[]', space=smem, size = 0x4, offset = 0x4, fixed_abs, tag = 'smem constant byte address 0x4 - core index']
  #allocation1 [shape = 'u32[144,128]{1,0:T(1,128)}', space=vmem, size = 0x12000, scoped, tag = 'internal scratch']
  %s0 = inlined_call_operand.hbm [shape: f32[1,2048], index: 0, kind: input, shape index: {}]
  %s1 = inlined_call_operand.hbm [shape: f32[1,2048], index: 1, kind: input, shape index: {}]
  %s2 = inlined_call_operand.hbm [shape: f32[1,2048], index: 2, kind: output, shape index: {}]
  %s3 = sld [smem:[#allocation0]]
  $region26: #{tpu_custom_call.1} parent=0
    _
  %s5 = ssub.s32 1, %s3
  %s6 = scalar_select 0, %s5, %s3
  $region1: #{tpu_custom_call.1} parent=0
    #allocation2 [shape = 'u8[8192]{0}', space=vmem, size = 0x2000, scoped, tag = 'input window, operand 0, single buffered']
    #allocation3 [shape = 's32[1]{0}', space=sflag, size = 0x4, scoped, tag = 'scoped memory for tpu_custom_call.1']
    #allocation4 [shape = 's32[1]{0}', space=sflag, size = 0x4, scoped, tag = 'scoped memory for tpu_custom_call.1']
    #allocation5 [shape = 'u8[8192]{0}', space=vmem, size = 0x2000, scoped, tag = 'input window, operand 1, single buffered']
    #allocation6 [shape = 's32[1]{0}', space=sflag, size = 0x4, scoped, tag = 'scoped memory for tpu_custom_call.1']
    #allocation7 [shape = 'u8[8192]{0}', space=vmem, size = 0x2000, scoped, tag = 'output window, operand 0, single buffered']
    %7 = vsyncpa [#allocation3], 0
    %8 = vsyncpa [#allocation6], 0
    %9 = vsyncpa [#allocation4], 0
    // Predicated region
    $region2: #{tpu_custom_call.1} parent=1 // pred_check
      _
    $region3: #{tpu_custom_call.1} parent=1 // pred_check_branch
      %11 = sbr.rel (0) target = $region5
    $region4: #{tpu_custom_call.1} parent=1 // pred_region
      %s13 = ssub.s32 256, 256
      %14 = vsyncadd [#allocation3], %s13
      %s16 = sshll.u32 [#allocation2], 4
      %s17 = int_to_ptr.vmem [resolvable:$true] %s16
      %19 = dma.hbm_to_vmem [thread:$0]  %s0, 256, %s17, [#allocation3]
    $region5: #{tpu_custom_call.1} parent=1 // pred_fallthru
      _
    // Predicated region
    $region6: #{tpu_custom_call.1} parent=1 // pred_check
      _
    $region7: #{tpu_custom_call.1} parent=1 // pred_check_branch
      %21 = sbr.rel (0) target = $region9
    $region8: #{tpu_custom_call.1} parent=1 // pred_region
      %s23 = ssub.s32 256, 256
      %24 = vsyncadd [#allocation6], %s23
      %s26 = sshll.u32 [#allocation5], 4
      %s27 = int_to_ptr.vmem [resolvable:$true] %s26
      %29 = dma.hbm_to_vmem [thread:$0]  %s1, 256, %s27, [#allocation6]
    $region9: #{tpu_custom_call.1} parent=1 // pred_fallthru
      _
    // Predicated region
    $region10: #{tpu_custom_call.1} parent=1 // pred_check
      _
    $region11: #{tpu_custom_call.1} parent=1 // pred_check_branch
      %31 = sbr.rel (0) target = $region13
    $region12: #{tpu_custom_call.1} parent=1 // pred_region
      %32 = dma.done [#allocation3], 256
    $region13: #{tpu_custom_call.1} parent=1 // pred_fallthru
      _
    // Predicated region
    $region14: #{tpu_custom_call.1} parent=1 // pred_check
      _
    $region15: #{tpu_custom_call.1} parent=1 // pred_check_branch
      %34 = sbr.rel (0) target = $region17
    $region16: #{tpu_custom_call.1} parent=1 // pred_region
      %35 = dma.done [#allocation6], 256
    $region17: #{tpu_custom_call.1} parent=1 // pred_fallthru
      _
    %v36 = vld [vmem:[#allocation2] sm:$0xff]
    %v37 = vld [vmem:[#allocation2 + $0x8] sm:$0xff]
    %v38 = vld [vmem:[#allocation5] sm:$0xff]
    %v39 = vld [vmem:[#allocation5 + $0x8] sm:$0xff]
    %v40 = vadd.f32 %v36, 2.0
    %v41 = vadd.f32 %v37, 2.0
    %v42 = vsub.f32 %v38, 1.0
    %v43 = vsub.f32 %v39, 1.0
    %v44 = vmul.f32 %v40, %v42
    %v45 = vmul.f32 %v41, %v43
    %v46 = vadd.f32 %v44, 3.0
    %v47 = vadd.f32 %v45, 3.0
    %48 = vst [vmem:[#allocation7] sm:$0xff] %v46
    %49 = vst [vmem:[#allocation7 + $0x8] sm:$0xff] %v47
    // Predicated region
    $region18: #{tpu_custom_call.1} parent=1 // pred_check
      _
    $region19: #{tpu_custom_call.1} parent=1 // pred_check_branch
      %51 = sbr.rel (0) target = $region21
    $region20: #{tpu_custom_call.1} parent=1 // pred_region
      %s53 = ssub.s32 256, 256
      %54 = vsyncadd [#allocation4], %s53
      %s56 = sshll.u32 [#allocation7], 4
      %s57 = int_to_ptr.vmem [resolvable:$true] %s56
      %59 = dma.vmem_to_hbm [thread:$0]  %s57, 256, %s2, [#allocation4]
    $region21: #{tpu_custom_call.1} parent=1 // pred_fallthru
      _
    // Predicated region
    $region22: #{tpu_custom_call.1} parent=1 // pred_check
      _
    $region23: #{tpu_custom_call.1} parent=1 // pred_check_branch
      %61 = sbr.rel (0) target = $region25
    $region24: #{tpu_custom_call.1} parent=1 // pred_region
      %62 = dma.done [#allocation4], 256
    $region25: #{tpu_custom_call.1} parent=1 // pred_fallthru
      _
    %63 = vsyncpa [#allocation3], 1
    %64 = vsyncpa [#allocation6], 1
    %65 = vsyncpa [#allocation4], 1

</llo_original>
